<compile_context>
chip_gen: v7x
topology: tpu7x:2x2x1
jax: 0.10.0
libtpu: 0.0.40
codegen_flags: <defaults>
</compile_context>

<pallas_src>
import jax
import jax.numpy as jnp
from jax.experimental import pallas as pl
from jax.experimental.pallas import tpu as pltpu


def _round_up(n, m):
    return ((n + m - 1) // m) * m


def _vmem_capacity_bytes():
    """Physical per-core VMEM (v5e/v6e: 128 MiB, v7x: 64 MiB); conservative fallback."""
    try:
        info = pltpu.get_tpu_info()
        cap = int(getattr(info, "vmem_capacity_bytes", 0) or 0)
        if cap > 0:
            return cap
    except Exception:
        pass
    return 64 << 20  # conservative (v7x per-TC)


def _tile_bytes(d_pad, tn, tb):
    """f32 VMEM bytes of one pipelined grid step (double-buffered inputs, conservative out x2)."""
    xcol = 2 * tb * tn if tn < d_pad else 0          # extra column-tile input only if tn < d_pad
    return 4 * (2 * d_pad * tn                       # resident output accumulator tile
                + 2 * tb * d_pad                     # x (full-width LHS), double-buffered
                + 2 * tb * 128                       # c (tb,1), lane-padded, double-buffered
                + xcol)


def _pick_tn(d_pad, tb, budget):
    """Largest 128-multiple divisor of d_pad whose working set fits the budget."""
    for t in range(d_pad, 127, -128):
        if d_pad % t == 0 and _tile_bytes(d_pad, t, tb) <= budget:
            return t
    return 128


def _accumulate(xl_ref, xr_ref, c_ref, out_ref, *, use_bf16):
    """Accumulate one rank-tb update  X^T @ (c * X[:, cols])  into the output tile."""
    b = pl.program_id(2)  # batch (reduction) axis — last grid axis

    @pl.when(b == 0)
    def _():
        out_ref[...] = jnp.zeros_like(out_ref)

    lhs = xl_ref[...]                                   # (tb, d_pad)
    xr = lhs if xr_ref is xl_ref else xr_ref[...]       # (tb, tn); same tile when tn == d_pad
    rhs = c_ref[...] * xr                               # scale in f32 on the VPU
    if use_bf16:
        lhs = lhs.astype(jnp.bfloat16)
        rhs = rhs.astype(jnp.bfloat16)
    # Contract axis 0 of both operands -> MXU feeds LHS transposed, no XLU transpose.
    out_ref[...] += jax.lax.dot_general(
        lhs, rhs,
        dimension_numbers=(((0,), (0,)), ((), ())),
        preferred_element_type=jnp.float32,
    )


def _make_kernel(two_x_inputs, use_bf16):
    if two_x_inputs:
        def kernel(x_ref, xcol_ref, c_ref, out_ref):
            _accumulate(x_ref, xcol_ref, c_ref, out_ref, use_bf16=use_bf16)
    else:
        def kernel(x_ref, c_ref, out_ref):
            _accumulate(x_ref, x_ref, c_ref, out_ref, use_bf16=use_bf16)
    return kernel


def vaup_forward(mean, va, xt, *, tb=512, small_fallback=True, use_bf16_matmul=False):
    """JAX/Pallas equivalent of vaup.forward.

    mean: (d,) float, va: (d, d) float, xt: (bs, 1, d) float -> (d, d) float32
    """
    mean = jnp.asarray(mean, jnp.float32)
    va = jnp.asarray(va, jnp.float32)
    xt = jnp.asarray(xt, jnp.float32)

    bs = xt.shape[0]
    if bs == 0:                      # mirrors `if bs >= 0.1: ... else: va = va`
        return va

    d = mean.shape[0]
    x = xt.reshape(bs, d)

    # c_i = p_i (1 - p_i), p_i = 1 + exp(-(x_i @ mean)); computed once in XLA.
    z = x @ mean.reshape(d, 1)                          # (bs, 1)
    p = 1.0 + jnp.exp(-z)
    c = p * (1.0 - p)                                   # (bs, 1)

    # Tiny problems: the kernel is pure fixed overhead; a fused XLA einsum wins.
    if small_fallback and bs <= 64 and d <= 64:
        return jnp.einsum('bi,bj->ij', c * x, x,
                          precision=jax.lax.Precision.HIGHEST) + va

    # ---- generation-aware tiling ---------------------------------------
    d_pad = _round_up(d, 128)                           # lane-dense output
    cap = _vmem_capacity_bytes()
    budget = int(cap * 0.75)                            # ~48 MiB on v7x, ~96 MiB on v5e/v6e

    tb_eff = _round_up(min(tb, _round_up(bs, 8)), 8)    # don't over-pad tiny batches
    tn = _pick_tn(d_pad, tb_eff, budget)
    while _tile_bytes(d_pad, tn, tb_eff) > budget and tb_eff > 128:
        tb_eff = max(128, _round_up(tb_eff // 2, 8))
        tn = _pick_tn(d_pad, tb_eff, budget)

    n_col = d_pad // tn
    n_b = -(-bs // tb_eff)
    # If the column axis has no parallelism, split the batch reduction 2-way so v7x's
    # second TensorCore has work; the two partial accumulators are summed outside.
    nc = 2 if (n_col == 1 and n_b >= 2) else 1
    n_b = _round_up(n_b, nc)
    nb_per_split = n_b // nc
    bs_pad = n_b * tb_eff

    # Zero padding is mathematically free: padded rows/columns contribute exactly 0.
    x_p = jnp.zeros((bs_pad, d_pad), jnp.float32).at[:bs, :d].set(x)
    c_p = jnp.zeros((bs_pad, 1), jnp.float32).at[:bs, :].set(c)

    grid = (nc, n_col, nb_per_split)                    # (split, column tiles, batch tiles)
    two_x = n_col > 1

    in_specs = [pl.BlockSpec((tb_eff, d_pad), lambda s, j, b: (s * nb_per_split + b, 0))]
    args = [x_p]
    if two_x:  # only when d_pad is too large for a single column tile
        in_specs.append(
            pl.BlockSpec((tb_eff, tn), lambda s, j, b: (s * nb_per_split + b, j)))
        args.append(x_p)
    in_specs.append(pl.BlockSpec((tb_eff, 1), lambda s, j, b: (s * nb_per_split + b, 0)))
    args.append(c_p)

    out_spec = pl.BlockSpec((None, d_pad, tn), lambda s, j, b: (s, 0, j))

    need = _tile_bytes(d_pad, tn, tb_eff)
    vmem_limit = int(min(cap - (2 << 20), max(need + (16 << 20), 32 << 20)))

    out_pad = pl.pallas_call(
        _make_kernel(two_x, use_bf16_matmul),
        out_shape=jax.ShapeDtypeStruct((nc, d_pad, d_pad), jnp.float32),
        grid_spec=pltpu.PrefetchScalarGridSpec(
            num_scalar_prefetch=0,
            grid=grid,
            in_specs=in_specs,
            out_specs=out_spec,
        ),
        compiler_params=pltpu.CompilerParams(
            dimension_semantics=("parallel", "parallel", "arbitrary"),
            vmem_limit_bytes=vmem_limit,
        ),
    )(*args)

    # Sum reduction splits, crop the padding; va never enters the kernel (single XLA add).
    return out_pad.sum(axis=0)[:d, :d] + va


def _reference_loop(mean, va, xt):
    """Pure-JAX reference mirroring the torch loop exactly."""
    w = jnp.asarray(mean, jnp.float32).reshape(-1, 1)
    s = jnp.zeros_like(jnp.asarray(va, jnp.float32))
    for i in range(xt.shape[0]):
        xi = jnp.asarray(xt[i], jnp.float32)            # (1, d)
        p = 1.0 + jnp.exp(-(xi @ w))                    # (1, 1)
        s = s + p * (1.0 - p) * (xi.T @ xi)             # (d, d)
    return s + jnp.asarray(va, jnp.float32)


def _reference_vec(mean, va, xt):
    """Vectorized reference (same math) for larger batches."""
    mean = jnp.asarray(mean, jnp.float32)
    va = jnp.asarray(va, jnp.float32)
    x = jnp.asarray(xt, jnp.float32).reshape(xt.shape[0], -1)
    p = 1.0 + jnp.exp(-(x @ mean))
    c = (p * (1.0 - p))[:, None]
    return jnp.einsum('bi,bj->ij', c * x, x,
                      precision=jax.lax.Precision.HIGHEST) + va


if __name__ == "__main__":
    key = jax.random.PRNGKey(0)
    k1, k2, k3, k4, k5, k6 = jax.random.split(key, 6)

    # Test 1: canonical small shapes (Pallas path forced; fallback disabled).
    bs, d = 16, 32
    mean = jax.random.normal(k1, (d,), jnp.float32)             # `mean` (pre-unsqueeze)
    va = jax.random.normal(k2, (d, d), jnp.float32)             # `va`
    xt = jax.random.normal(k3, (bs, 1, d), jnp.float32) * 0.1   # `xt`, rows x1[i] of shape (1, d)

    out = jax.block_until_ready(vaup_forward(mean, va, xt, small_fallback=False))
    ref = _reference_loop(mean, va, xt)
    assert out.shape == (d, d)
    assert jnp.allclose(out, ref, atol=1e-4, rtol=1e-4), float(jnp.max(jnp.abs(out - ref)))

    # Test 2: larger batch — exercises batch tiling, padding, and the 2-way reduction
    # split (v7x two-TensorCore path) with the partial-sum epilogue.
    bs2, d2 = 700, 96
    mean2 = jax.random.normal(k4, (d2,), jnp.float32)
    va2 = jax.random.normal(k5, (d2, d2), jnp.float32)
    xt2 = jax.random.normal(k6, (bs2, 1, d2), jnp.float32) * 0.05

    out2 = jax.block_until_ready(vaup_forward(mean2, va2, xt2, small_fallback=False))
    ref2 = _reference_vec(mean2, va2, xt2)
    assert out2.shape == (d2, d2)
    assert jnp.allclose(out2, ref2, atol=1e-3, rtol=1e-3), float(jnp.max(jnp.abs(out2 - ref2)))

    print("KERNEL_OK")
</pallas_src>

<mosaic_0001>
module attributes {stable_mosaic.version = 11 : i64} {
  func.func @kernel(%arg0: i32, %arg1: i32, %arg2: i32, %arg3: memref<16x128xf32, #tpu.memory_space<vmem>>, %arg4: memref<16x1xf32, #tpu.memory_space<vmem>>, %arg5: memref<1x128x128xf32, #tpu.memory_space<vmem>>) attributes {dimension_semantics = [#tpu.dimension_semantics<parallel>, #tpu.dimension_semantics<parallel>, #tpu.dimension_semantics<arbitrary>], iteration_bounds = array<i64: 1, 1, 1>, scalar_prefetch = 0 : i64, scratch_operands = 0 : i64, tpu.core_type = #tpu.core_type<tc>, window_params = [{transform_indices = @transform_0, window_bounds = array<i64: 16, 128>}, {transform_indices = @transform_1, window_bounds = array<i64: 16, 1>}, {transform_indices = @transform_2, window_bounds = array<i64: 1, 128, 128>}]} {
    %c0_i32 = arith.constant 0 : i32
    %0 = arith.cmpi eq, %arg2, %c0_i32 : i32
    %1 = arith.extui %0 : i1 to i32
    %c0_i32_0 = arith.constant 0 : i32
    %2 = arith.cmpi ne, %1, %c0_i32_0 : i32
    scf.if %2 {
      %cst_10 = arith.constant 0.000000e+00 : f32
      %14 = vector.broadcast %cst_10 : f32 to vector<128x128xf32>
      %c0_11 = arith.constant 0 : index
      %c0_12 = arith.constant 0 : index
      %c0_13 = arith.constant 0 : index
      %15 = vector.load %arg5[%c0_11, %c0_12, %c0_13] : memref<1x128x128xf32, #tpu.memory_space<vmem>>, vector<1x128x128xf32>
      %16 = vector.shape_cast %15 : vector<1x128x128xf32> to vector<128x128xf32>
      %17 = vector.shape_cast %14 : vector<128x128xf32> to vector<1x128x128xf32>
      tpu.vector_store %arg5[%c0_11, %c0_12, %c0_13], %17 {strides = array<i32>} : memref<1x128x128xf32, #tpu.memory_space<vmem>>, vector<1x128x128xf32>,
    } else {
    }
    %c0 = arith.constant 0 : index
    %c0_1 = arith.constant 0 : index
    %3 = vector.load %arg3[%c0, %c0_1] : memref<16x128xf32, #tpu.memory_space<vmem>>, vector<16x128xf32>
    %c0_2 = arith.constant 0 : index
    %c0_3 = arith.constant 0 : index
    %4 = vector.load %arg4[%c0_2, %c0_3] : memref<16x1xf32, #tpu.memory_space<vmem>>, vector<16x1xf32>
    %5 = vector.broadcast %4 : vector<16x1xf32> to vector<16x128xf32>
    %6 = arith.mulf %5, %3 : vector<16x128xf32>
    %c0_4 = arith.constant 0 : index
    %c0_5 = arith.constant 0 : index
    %c0_6 = arith.constant 0 : index
    %7 = vector.load %arg5[%c0_4, %c0_5, %c0_6] : memref<1x128x128xf32, #tpu.memory_space<vmem>>, vector<1x128x128xf32>
    %8 = vector.shape_cast %7 : vector<1x128x128xf32> to vector<128x128xf32>
    %cst = arith.constant dense<0.000000e+00> : vector<128x128xf32>
    %9 = tpu.matmul %3, %6, %cst {dimension_numbers = #tpu.dot_dimension_numbers<[0], [0], [1], [1], [0, 1, 1, 1], [], []>} : vector<16x128xf32>, vector<16x128xf32>, vector<128x128xf32> -> vector<128x128xf32>
    %10 = arith.addf %8, %9 : vector<128x128xf32>
    %c0_7 = arith.constant 0 : index
    %c0_8 = arith.constant 0 : index
    %c0_9 = arith.constant 0 : index
    %11 = vector.load %arg5[%c0_7, %c0_8, %c0_9] : memref<1x128x128xf32, #tpu.memory_space<vmem>>, vector<1x128x128xf32>
    %12 = vector.shape_cast %11 : vector<1x128x128xf32> to vector<128x128xf32>
    %13 = vector.shape_cast %10 : vector<128x128xf32> to vector<1x128x128xf32>
    tpu.vector_store %arg5[%c0_7, %c0_8, %c0_9], %13 {strides = array<i32>} : memref<1x128x128xf32, #tpu.memory_space<vmem>>, vector<1x128x128xf32>,
    return
  }
  func.func @transform_0(%arg0: i32, %arg1: i32, %arg2: i32) -> (i32, i32) {
    %c1_i32 = arith.constant 1 : i32
    %0 = arith.muli %arg0, %c1_i32 : i32
    %1 = arith.addi %0, %arg2 : i32
    %c0_i32 = arith.constant 0 : i32
    %c0_i32_0 = arith.constant 0 : i32
    return %1, %c0_i32 : i32, i32
  }
  func.func @transform_1(%arg0: i32, %arg1: i32, %arg2: i32) -> (i32, i32) {
    %c1_i32 = arith.constant 1 : i32
    %0 = arith.muli %arg0, %c1_i32 : i32
    %1 = arith.addi %0, %arg2 : i32
    %c0_i32 = arith.constant 0 : i32
    %c0_i32_0 = arith.constant 0 : i32
    return %1, %c0_i32 : i32, i32
  }
  func.func @transform_2(%arg0: i32, %arg1: i32, %arg2: i32) -> (i32, i32, i32) {
    %c0_i32 = arith.constant 0 : i32
    %c0_i32_0 = arith.constant 0 : i32
    return %arg0, %c0_i32, %arg1 : i32, i32, i32
  }
}

</mosaic_0001>

<llo_original>
// kernel: tpu_custom_call.1
$region0: #{tpu_custom_call.1}
  #allocation0 [shape = 'u32[]', space=smem, size = 0x4, offset = 0x4, fixed_abs, tag = 'smem constant byte address 0x4 - core index']
  #allocation1 [shape = 'u32[144,128]{1,0:T(1,128)}', space=vmem, size = 0x12000, scoped, tag = 'internal scratch']
  %s0 = inlined_call_operand.vmem [shape: f32[16,128], index: 0, kind: input, shape index: {}]
  %s1 = inlined_call_operand.vmem [shape: f32[16,1], index: 1, kind: input, shape index: {}]
  %s2 = inlined_call_operand.hbm [shape: f32[1,128,128], index: 2, kind: output, shape index: {}]
  %s3 = sld [smem:[#allocation0]]
  $region22: #{tpu_custom_call.1} parent=0
    _
  %s5 = ssub.s32 1, %s3
  %s6 = scalar_select 0, %s5, %s3
  $region1: #{tpu_custom_call.1} parent=0
    #allocation2 [shape = 'u8[65536]{0}', space=vmem, size = 0x10000, scoped, tag = 'output window, operand 0, single buffered']
    #allocation3 [shape = 's32[1]{0}', space=sflag, size = 0x4, scoped, tag = 'scoped memory for tpu_custom_call.1']
    %7 = vsyncpa [#allocation3], 0
    // Predicated region
    $region2: #{tpu_custom_call.1} parent=1 // pred_check
      _
    $region3: #{tpu_custom_call.1} parent=1 // pred_check_branch
      %9 = sbr.rel (0) target = $region5
    $region4: #{tpu_custom_call.1} parent=1 // pred_region
      %s10 = sadd.s32 0, 0
      %s11 = smul.u32 2, %s10
      %p12 = scmp.lt.s32.totalorder %s11, 1
      %s13 = scalar_select %p12, %s11, 1
      %s14 = smul.addr %s13, 8
      %s15 = scalar_lea.vmem %s0, %s14
      %s16 = sadd.s32 0, 0
      %s17 = smul.u32 2, %s16
    $region5: #{tpu_custom_call.1} parent=1 // pred_fallthru
      _
    // Predicated region
    $region6: #{tpu_custom_call.1} parent=1 // pred_check
      _
    $region7: #{tpu_custom_call.1} parent=1 // pred_check_branch
      %19 = sbr.rel (0) target = $region9
    $region8: #{tpu_custom_call.1} parent=1 // pred_region
      %s20 = sadd.s32 0, 0
      %s21 = smul.u32 2, %s20
      %p22 = scmp.lt.s32.totalorder %s21, 1
      %s23 = scalar_select %p22, %s21, 1
      %s24 = smul.addr %s23, 8
      %s25 = scalar_lea.vmem %s1, %s24
      %s26 = sadd.s32 0, 0
      %s27 = smul.u32 2, %s26
    $region9: #{tpu_custom_call.1} parent=1 // pred_fallthru
      _
    %s28 = sadd.s32 0, 0
    %s29 = smul.u32 2, %s28
    %p30 = scmp.lt.s32.totalorder %s29, 1
    %s31 = scalar_select %p30, %s29, 1
    %s32 = smul.addr %s31, 8
    %s33 = scalar_lea.vmem %s0, %s32
    %s34 = sadd.s32 0, 0
    %s35 = smul.u32 2, %s34
    %p36 = scmp.lt.s32.totalorder %s35, 1
    %s37 = scalar_select %p36, %s35, 1
    %s38 = smul.addr %s37, 8
    %s39 = scalar_lea.vmem %s1, %s38
    %s40 = sadd.s32 0, 0
    %s41 = smul.u32 2, %s40
    %p42 = scmp.lt.s32.totalorder %s41, 1
    %s43 = scalar_select %p42, %s41, 1
    %s44 = smul.addr %s43, 8
    %s45 = scalar_lea.vmem %s0, %s44
    %s46 = sadd.s32 0, 0
    %s47 = smul.u32 2, %s46
    %s48 = sadd.s32 0, 0
    %s49 = smul.u32 2, %s48
    %p50 = scmp.lt.s32.totalorder %s49, 1
    %s51 = scalar_select %p50, %s49, 1
    %s52 = smul.addr %s51, 8
    %s53 = scalar_lea.vmem %s1, %s52
    %s54 = sadd.s32 0, 0
    %s55 = smul.u32 2, %s54
    %p56 = scmp.eq.s32.totalorder 0, 0
    // Predicated region
    $region10: #{tpu_custom_call.1} parent=1 // pred_check
      %p57 = pneg %p56
    $region11: #{tpu_custom_call.1} parent=1 // pred_check_branch
      %59 = sbr.rel (%p57) target = $region13
    $region12: #{tpu_custom_call.1} parent=1 // pred_region
      %60 = vst [vmem:[#allocation2] sm:$0xff] 0.0
      %61 = vst [vmem:[#allocation2 + $0x8] sm:$0xff] 0.0
      %62 = vst [vmem:[#allocation2 + $0x10] sm:$0xff] 0.0
      %63 = vst [vmem:[#allocation2 + $0x18] sm:$0xff] 0.0
      %64 = vst [vmem:[#allocation2 + $0x20] sm:$0xff] 0.0
      %65 = vst [vmem:[#allocation2 + $0x28] sm:$0xff] 0.0
      %66 = vst [vmem:[#allocation2 + $0x30] sm:$0xff] 0.0
      %67 = vst [vmem:[#allocation2 + $0x38] sm:$0xff] 0.0
      %68 = vst [vmem:[#allocation2 + $0x40] sm:$0xff] 0.0
      %69 = vst [vmem:[#allocation2 + $0x48] sm:$0xff] 0.0
      %70 = vst [vmem:[#allocation2 + $0x50] sm:$0xff] 0.0
      %71 = vst [vmem:[#allocation2 + $0x58] sm:$0xff] 0.0
      %72 = vst [vmem:[#allocation2 + $0x60] sm:$0xff] 0.0
      %73 = vst [vmem:[#allocation2 + $0x68] sm:$0xff] 0.0
      %74 = vst [vmem:[#allocation2 + $0x70] sm:$0xff] 0.0
      %75 = vst [vmem:[#allocation2 + $0x78] sm:$0xff] 0.0
    $region13: #{tpu_custom_call.1} parent=1 // pred_fallthru
      _
    %v76 = vld [vmem:[%s45] sm:$0xff]
    %v77 = vld [vmem:[%s45 + $0x8] sm:$0xff]
    %v78 = vld [vmem:[%s53] sm:$0xff]
    %v79 = vld [vmem:[%s53 + $0x8] sm:$0xff]
    %81 = vset.pattern.permute.xlu0 0
    %82 = vperm.xlu0 %81, %v78
    %v83 = vpop.permute.xlu0 %82
    %86 = vset.pattern.permute.xlu0 0
    %87 = vperm.xlu0 %86, %v79
    %v88 = vpop.permute.xlu0 %87
    %v90 = vmul.f32 %v83, %v76
    %v91 = vmul.f32 %v88, %v77
    %v92 = vld [vmem:[#allocation2] sm:$0xff]
    %v93 = vld [vmem:[#allocation2 + $0x8] sm:$0xff]
    %v94 = vld [vmem:[#allocation2 + $0x10] sm:$0xff]
    %v95 = vld [vmem:[#allocation2 + $0x18] sm:$0xff]
    %v96 = vld [vmem:[#allocation2 + $0x20] sm:$0xff]
    %v97 = vld [vmem:[#allocation2 + $0x28] sm:$0xff]
    %v98 = vld [vmem:[#allocation2 + $0x30] sm:$0xff]
    %v99 = vld [vmem:[#allocation2 + $0x38] sm:$0xff]
    %v100 = vld [vmem:[#allocation2 + $0x40] sm:$0xff]
    %v101 = vld [vmem:[#allocation2 + $0x48] sm:$0xff]
    %v102 = vld [vmem:[#allocation2 + $0x50] sm:$0xff]
    %v103 = vld [vmem:[#allocation2 + $0x58] sm:$0xff]
    %v104 = vld [vmem:[#allocation2 + $0x60] sm:$0xff]
    %v105 = vld [vmem:[#allocation2 + $0x68] sm:$0xff]
    %v106 = vld [vmem:[#allocation2 + $0x70] sm:$0xff]
    %v107 = vld [vmem:[#allocation2 + $0x78] sm:$0xff]
    %108 = vxpose.xlu0.b32.start [1/16] %v76, 128
    %109 = vxpose.xlu0.b32.cont [2/16] %v77, 128
    %110 = vxpose.xlu0.b32.cont [3/16] 0.0, 128
    %111 = vxpose.xlu0.b32.cont [4/16] 0.0, 128
    %112 = vxpose.xlu0.b32.cont [5/16] 0.0, 128
    %113 = vxpose.xlu0.b32.cont [6/16] 0.0, 128
    %114 = vxpose.xlu0.b32.cont [7/16] 0.0, 128
    %115 = vxpose.xlu0.b32.cont [8/16] 0.0, 128
    %116 = vxpose.xlu0.b32.cont [9/16] 0.0, 128
    %117 = vxpose.xlu0.b32.cont [10/16] 0.0, 128
    %118 = vxpose.xlu0.b32.cont [11/16] 0.0, 128
    %119 = vxpose.xlu0.b32.cont [12/16] 0.0, 128
    %120 = vxpose.xlu0.b32.cont [13/16] 0.0, 128
    %121 = vxpose.xlu0.b32.cont [14/16] 0.0, 128
    %122 = vxpose.xlu0.b32.cont [15/16] 0.0, 128
    %123 = vxpose.xlu0.b32.end [16/16] 0.0, 128
    %v124 = vpop.trf.xlu0
    %v125 = vpop.trf.xlu0
    %v126 = vpop.trf.xlu0
    %v127 = vpop.trf.xlu0
    %v128 = vpop.trf.xlu0
    %v129 = vpop.trf.xlu0
    %v130 = vpop.trf.xlu0
    %v131 = vpop.trf.xlu0
    %v132 = vpop.trf.xlu0
    %v133 = vpop.trf.xlu0
    %v134 = vpop.trf.xlu0
    %v135 = vpop.trf.xlu0
    %v136 = vpop.trf.xlu0
    %v137 = vpop.trf.xlu0
    %v138 = vpop.trf.xlu0
    %v139 = vpop.trf.xlu0
    %vm140 = vcmask 130048
    %v142 = vsel %vm140, %v124, 0
    %v145 = vsel %vm140, %v125, 0
    %v148 = vsel %vm140, %v126, 0
    %v151 = vsel %vm140, %v127, 0
    %v154 = vsel %vm140, %v128, 0
    %v157 = vsel %vm140, %v129, 0
    %v160 = vsel %vm140, %v130, 0
    %v163 = vsel %vm140, %v131, 0
    %v166 = vsel %vm140, %v132, 0
    %v169 = vsel %vm140, %v133, 0
    %v172 = vsel %vm140, %v134, 0
    %v175 = vsel %vm140, %v135, 0
    %v178 = vsel %vm140, %v136, 0
    %v181 = vsel %vm140, %v137, 0
    %v184 = vsel %vm140, %v138, 0
    %v187 = vsel %vm140, %v139, 0
    %189 = vmatprep.subr.mxu0 0.0
    %190 = vmatpush1.msra.mxu0 %v90
    %191 = vmatprep.subr.mxu0 0.0
    %192 = vmatpush1.msra.mxu0 %v91
    %193 = vmatprep.subr.mxu0 0.0
    %194 = vmatpush1.msra.mxu0 0.0
    %195 = vmatprep.subr.mxu0 0.0
    %196 = vmatpush1.msra.mxu0 0.0
    %197 = vmatprep.subr.mxu0 0.0
    %198 = vmatpush1.msra.mxu0 0.0
    %199 = vmatprep.subr.mxu0 0.0
    %200 = vmatpush1.msra.mxu0 0.0
    %201 = vmatprep.subr.mxu0 0.0
    %202 = vmatpush1.msra.mxu0 0.0
    %203 = vmatprep.subr.mxu0 0.0
    %204 = vmatpush1.msra.mxu0 0.0
    %205 = vmatprep.subr.mxu0 0.0
    %206 = vmatpush1.msra.mxu0 0.0
    %207 = vmatprep.subr.mxu0 0.0
    %208 = vmatpush1.msra.mxu0 0.0
    %209 = vmatprep.subr.mxu0 0.0
    %210 = vmatpush1.msra.mxu0 0.0
    %211 = vmatprep.subr.mxu0 0.0
    %212 = vmatpush1.msra.mxu0 0.0
    %213 = vmatprep.subr.mxu0 0.0
    %214 = vmatpush1.msra.mxu0 0.0
    %215 = vmatprep.subr.mxu0 0.0
    %216 = vmatpush1.msra.mxu0 0.0
    %217 = vmatprep.subr.mxu0 0.0
    %218 = vmatpush1.msra.mxu0 0.0
    %219 = vmatprep.subr.mxu0 0.0
    %220 = vmatpush1.msra.mxu0 0.0
    %221 = vmatprep.subr.mxu0 0.0
    %222 = vmatpush1.msra.mxu0 0.0
    %223 = vmatprep.subr.mxu0 0.0
    %224 = vmatpush1.msra.mxu0 0.0
    %225 = vmatprep.subr.mxu0 0.0
    %226 = vmatpush1.msra.mxu0 0.0
    %227 = vmatprep.subr.mxu0 0.0
    %228 = vmatpush1.msra.mxu0 0.0
    %229 = vmatprep.subr.mxu0 0.0
    %230 = vmatpush1.msra.mxu0 0.0
    %231 = vmatprep.subr.mxu0 0.0
    %232 = vmatpush1.msra.mxu0 0.0
    %233 = vmatprep.subr.mxu0 0.0
    %234 = vmatpush1.msra.mxu0 0.0
    %235 = vmatprep.subr.mxu0 0.0
    %236 = vmatpush1.msra.mxu0 0.0
    %237 = vmatprep.subr.mxu0 0.0
    %238 = vmatpush1.msra.mxu0 0.0
    %239 = vmatprep.subr.mxu0 0.0
    %240 = vmatpush1.msra.mxu0 0.0
    %241 = vmatprep.subr.mxu0 0.0
    %242 = vmatpush1.msra.mxu0 0.0
    %243 = vmatprep.subr.mxu0 0.0
    %244 = vmatpush1.msra.mxu0 0.0
    %245 = vmatprep.subr.mxu0 0.0
    %246 = vmatpush1.msra.mxu0 0.0
    %247 = vmatprep.subr.mxu0 0.0
    %248 = vmatpush1.msra.mxu0 0.0
    %249 = vmatprep.subr.mxu0 0.0
    %250 = vmatpush1.msra.mxu0 0.0
    %251 = vmatprep.subr.mxu0 0.0
    %252 = vmatpush1.msra.mxu0 0.0
    %253 = vmatprep.mubr.f32.mxu0 0.0
    %254 = vmatmul.mubr.f32.gmra.mrb[0].mxu0 %v142
    %v255 = vpop.f32.mrb[0].mxu0
    %v256 = vadd.f32 0.0, %v255
    %v257 = vpop.f32.mrb[0].mxu0
    %258 = vmatprep.mubr.f32.mxu0 0.0
    %259 = vmatmul.mubr.f32.gmra.mrb[0].mxu0 %v145
    %v260 = vpop.f32.mrb[0].mxu0
    %v261 = vadd.f32 0.0, %v260
    %v262 = vpop.f32.mrb[0].mxu0
    %263 = vmatprep.mubr.f32.mxu0 0.0
    %264 = vmatmul.mubr.f32.gmra.mrb[0].mxu0 %v148
    %v265 = vpop.f32.mrb[0].mxu0
    %v266 = vadd.f32 0.0, %v265
    %v267 = vpop.f32.mrb[0].mxu0
    %268 = vmatprep.mubr.f32.mxu0 0.0
    %269 = vmatmul.mubr.f32.gmra.mrb[0].mxu0 %v151
    %v270 = vpop.f32.mrb[0].mxu0
    %v271 = vadd.f32 0.0, %v270
    %v272 = vpop.f32.mrb[0].mxu0
    %273 = vmatprep.mubr.f32.mxu0 0.0
    %274 = vmatmul.mubr.f32.gmra.mrb[0].mxu0 %v154
    %v275 = vpop.f32.mrb[0].mxu0
    %v276 = vadd.f32 0.0, %v275
    %v277 = vpop.f32.mrb[0].mxu0
    %278 = vmatprep.mubr.f32.mxu0 0.0
    %279 = vmatmul.mubr.f32.gmra.mrb[0].mxu0 %v157
    %v280 = vpop.f32.mrb[0].mxu0
    %v281 = vadd.f32 0.0, %v280
    %v282 = vpop.f32.mrb[0].mxu0
    %283 = vmatprep.mubr.f32.mxu0 0.0
    %284 = vmatmul.mubr.f32.gmra.mrb[0].mxu0 %v160
    %v285 = vpop.f32.mrb[0].mxu0
    %v286 = vadd.f32 0.0, %v285
    %v287 = vpop.f32.mrb[0].mxu0
    %288 = vmatprep.mubr.f32.mxu0 0.0
    %289 = vmatmul.mubr.f32.gmra.mrb[0].mxu0 %v163
    %v290 = vpop.f32.mrb[0].mxu0
    %v291 = vadd.f32 0.0, %v290
    %v292 = vpop.f32.mrb[0].mxu0
    %293 = vmatprep.mubr.f32.mxu0 0.0
    %294 = vmatmul.mubr.f32.gmra.mrb[0].mxu0 %v166
    %v295 = vpop.f32.mrb[0].mxu0
    %v296 = vadd.f32 0.0, %v295
    %v297 = vpop.f32.mrb[0].mxu0
    %298 = vmatprep.mubr.f32.mxu0 0.0
    %299 = vmatmul.mubr.f32.gmra.mrb[0].mxu0 %v169
    %v300 = vpop.f32.mrb[0].mxu0
    %v301 = vadd.f32 0.0, %v300
    %v302 = vpop.f32.mrb[0].mxu0
    %303 = vmatprep.mubr.f32.mxu0 0.0
    %304 = vmatmul.mubr.f32.gmra.mrb[0].mxu0 %v172
    %v305 = vpop.f32.mrb[0].mxu0
    %v306 = vadd.f32 0.0, %v305
    %v307 = vpop.f32.mrb[0].mxu0
    %308 = vmatprep.mubr.f32.mxu0 0.0
    %309 = vmatmul.mubr.f32.gmra.mrb[0].mxu0 %v175
    %v310 = vpop.f32.mrb[0].mxu0
    %v311 = vadd.f32 0.0, %v310
    %v312 = vpop.f32.mrb[0].mxu0
    %313 = vmatprep.mubr.f32.mxu0 0.0
    %314 = vmatmul.mubr.f32.gmra.mrb[0].mxu0 %v178
    %v315 = vpop.f32.mrb[0].mxu0
    %v316 = vadd.f32 0.0, %v315
    %v317 = vpop.f32.mrb[0].mxu0
    %318 = vmatprep.mubr.f32.mxu0 0.0
    %319 = vmatmul.mubr.f32.gmra.mrb[0].mxu0 %v181
    %v320 = vpop.f32.mrb[0].mxu0
    %v321 = vadd.f32 0.0, %v320
    %v322 = vpop.f32.mrb[0].mxu0
    %323 = vmatprep.mubr.f32.mxu0 0.0
    %324 = vmatmul.mubr.f32.gmra.mrb[0].mxu0 %v184
    %v325 = vpop.f32.mrb[0].mxu0
    %v326 = vadd.f32 0.0, %v325
    %v327 = vpop.f32.mrb[0].mxu0
    %328 = vmatprep.mubr.f32.mxu0 0.0
    %329 = vmatmul.mubr.f32.gmra.mrb[0].mxu0 %v187
    %v330 = vpop.f32.mrb[0].mxu0
    %v331 = vadd.f32 0.0, %v330
    %v332 = vpop.f32.mrb[0].mxu0
    %333 = vdwg.mxu0
    %v334 = vadd.f32 %v92, %v256
    %v335 = vadd.f32 %v93, %v261
    %v336 = vadd.f32 %v94, %v266
    %v337 = vadd.f32 %v95, %v271
    %v338 = vadd.f32 %v96, %v276
    %v339 = vadd.f32 %v97, %v281
    %v340 = vadd.f32 %v98, %v286
    %v341 = vadd.f32 %v99, %v291
    %v342 = vadd.f32 %v100, %v296
    %v343 = vadd.f32 %v101, %v301
    %v344 = vadd.f32 %v102, %v306
    %v345 = vadd.f32 %v103, %v311
    %v346 = vadd.f32 %v104, %v316
    %v347 = vadd.f32 %v105, %v321
    %v348 = vadd.f32 %v106, %v326
    %v349 = vadd.f32 %v107, %v331
    %350 = vst [vmem:[#allocation2] sm:$0xff] %v334
    %351 = vst [vmem:[#allocation2 + $0x8] sm:$0xff] %v335
    %352 = vst [vmem:[#allocation2 + $0x10] sm:$0xff] %v336
    %353 = vst [vmem:[#allocation2 + $0x18] sm:$0xff] %v337
    %354 = vst [vmem:[#allocation2 + $0x20] sm:$0xff] %v338
    %355 = vst [vmem:[#allocation2 + $0x28] sm:$0xff] %v339
    %356 = vst [vmem:[#allocation2 + $0x30] sm:$0xff] %v340
    %357 = vst [vmem:[#allocation2 + $0x38] sm:$0xff] %v341
    %358 = vst [vmem:[#allocation2 + $0x40] sm:$0xff] %v342
    %359 = vst [vmem:[#allocation2 + $0x48] sm:$0xff] %v343
    %360 = vst [vmem:[#allocation2 + $0x50] sm:$0xff] %v344
    %361 = vst [vmem:[#allocation2 + $0x58] sm:$0xff] %v345
    %362 = vst [vmem:[#allocation2 + $0x60] sm:$0xff] %v346
    %363 = vst [vmem:[#allocation2 + $0x68] sm:$0xff] %v347
    %364 = vst [vmem:[#allocation2 + $0x70] sm:$0xff] %v348
    %365 = vst [vmem:[#allocation2 + $0x78] sm:$0xff] %v349
    // Predicated region
    $region14: #{tpu_custom_call.1} parent=1 // pred_check
      _
    $region15: #{tpu_custom_call.1} parent=1 // pred_check_branch
      %367 = sbr.rel (0) target = $region17
    $region16: #{tpu_custom_call.1} parent=1 // pred_region
      %s369 = ssub.s32 2048, 2048
      %370 = vsyncadd [#allocation3], %s369
      %s371 = sshll.u32 [#allocation2], 4
      %s372 = int_to_ptr.vmem [resolvable:$true] %s371
      %377 = dma.vmem_to_hbm [thread:$0]  %s372, 2048, %s2, [#allocation3], 128, 128, 8
    $region17: #{tpu_custom_call.1} parent=1 // pred_fallthru
      _
    // Predicated region
    $region18: #{tpu_custom_call.1} parent=1 // pred_check
      _
    $region19: #{tpu_custom_call.1} parent=1 // pred_check_branch
      %379 = sbr.rel (0) target = $region21
    $region20: #{tpu_custom_call.1} parent=1 // pred_region
      %380 = dma.done [#allocation3], 2048
    $region21: #{tpu_custom_call.1} parent=1 // pred_fallthru
      _
    %381 = vsyncpa [#allocation3], 1

</llo_original>
